<compile_context>
chip_gen: v5e
topology: v5e:2x2
jax: 0.10.0
libtpu: 0.0.40
codegen_flags: <defaults>
</compile_context>

<pallas_src>
from functools import partial

import numpy as np
import jax
import jax.numpy as jnp
from jax.experimental import pallas as pl
from jax.experimental.pallas import tpu as pltpu


# ---------------------------------------------------------------------------
# Deterministic filter construction (numpy port of the reference get_kernel)
# ---------------------------------------------------------------------------
def get_kernel(factor, kernel_type, phase, kernel_width, support=None, sigma=None):
    assert kernel_type in ['lanczos', 'gauss', 'box']
    if phase == 0.5 and kernel_type != 'box':
        kernel = np.zeros([kernel_width - 1, kernel_width - 1])
    else:
        kernel = np.zeros([kernel_width, kernel_width])
    if kernel_type == 'box':
        assert phase == 0.5
        kernel[:] = 1.0 / (kernel_width * kernel_width)
    elif kernel_type == 'gauss':
        assert sigma and phase != 0.5
        center = (kernel_width + 1.0) / 2.0
        sigma_sq = sigma * sigma
        for i in range(1, kernel.shape[0] + 1):
            for j in range(1, kernel.shape[1] + 1):
                di = (i - center) / 2.0
                dj = (j - center) / 2.0
                kernel[i - 1][j - 1] = np.exp(-(di * di + dj * dj) / (2 * sigma_sq))
                kernel[i - 1][j - 1] /= (2.0 * np.pi * sigma_sq)
    elif kernel_type == 'lanczos':
        assert support
        center = (kernel_width + 1) / 2.0
        for i in range(1, kernel.shape[0] + 1):
            for j in range(1, kernel.shape[1] + 1):
                if phase == 0.5:
                    di = abs(i + 0.5 - center) / factor
                    dj = abs(j + 0.5 - center) / factor
                else:
                    di = abs(i - center) / factor
                    dj = abs(j - center) / factor
                val = 1
                if di != 0:
                    val = val * support * np.sin(np.pi * di) * np.sin(np.pi * di / support)
                    val = val / (np.pi * np.pi * di * di)
                if dj != 0:
                    val = val * support * np.sin(np.pi * dj) * np.sin(np.pi * dj / support)
                    val = val / (np.pi * np.pi * dj * dj)
                kernel[i - 1][j - 1] = val
    else:
        assert False
    kernel /= kernel.sum()
    return kernel


# ---------------------------------------------------------------------------
# Pallas kernel: one block of B (batch*channel)-planes per grid step.
#   ah_ref  : (HO, H)   height band matrix (taps + stride + replication pad), resident
#   awt_ref : (W, WO)   width  band matrix (transposed),                      resident
#   x_ref   : (B, H, W) input planes (native dtype, no upcast)
#   o_ref   : (B, HO*WO) when flatten_out else (B, HO, WO)
# Exactly two MXU matmuls cover the whole block (no per-plane loop).
# ---------------------------------------------------------------------------
def _downsampler_kernel(ah_ref, awt_ref, x_ref, o_ref, *, precision, flatten_out):
    B, H, W = x_ref.shape
    HO = ah_ref.shape[0]
    WO = awt_ref.shape[1]

    ah = ah_ref[...]                                   # (HO, H)
    awt = awt_ref[...]                                 # (W, WO)

    # --- W pass: one matmul over the whole plane block ---------------------
    t = jnp.dot(x_ref[...].reshape(B * H, W), awt,
                preferred_element_type=jnp.float32,
                precision=precision)                   # (B*H, WO) f32 accumulate
    t = t.astype(ah.dtype)

    # --- relayout intermediate (B,H,WO) -> (H, B*WO) for the H pass --------
    t = pltpu.einshape("bhw->hbw", t.reshape(B, H, WO)).reshape(H, B * WO)

    # --- H pass: one matmul -------------------------------------------------
    o = jnp.dot(ah, t, preferred_element_type=jnp.float32,
                precision=precision)                   # (HO, B*WO)

    # --- back to plane-major and store once ---------------------------------
    o = pltpu.einshape("obw->bow", o.reshape(HO, B, WO))   # (B, HO, WO)
    if flatten_out:
        o_ref[...] = o.reshape(B, HO * WO).astype(o_ref.dtype)
    else:
        o_ref[...] = o.astype(o_ref.dtype)


# ---------------------------------------------------------------------------
# Wrapper: builds the separable band matrices (taps + stride + replication pad
# folded in), picks plane-block size / grid, launches the Pallas kernel.
# ---------------------------------------------------------------------------
def downsampler_forward(x, kernel2d, bias=None, factor=2, preserve_size=True,
                        plane_block_bytes=8 << 20):
    N, C, H, W = x.shape
    S = int(factor)
    k2d = np.asarray(kernel2d, dtype=np.float64)
    KH, KW = k2d.shape

    # --- rank-1 (separable) factorization of the 2D filter ------------------
    u, sv, vt = np.linalg.svd(k2d)
    tap_h = u[:, 0] * np.sqrt(sv[0])
    tap_w = vt[0, :] * np.sqrt(sv[0])
    if tap_h.sum() < 0:
        tap_h, tap_w = -tap_h, -tap_w
    # lanczos / gauss / box kernels produced by get_kernel are all separable.
    assert np.allclose(np.outer(tap_h, tap_w), k2d, atol=1e-10), "filter not separable"

    pad = 0
    if preserve_size:
        pad = (KH - 1) // 2 if KH % 2 == 1 else (KH - S) // 2
    HO = (H + 2 * pad - KH) // S + 1
    WO = (W + 2 * pad - KW) // S + 1

    # Band matrix per axis: A[o, clip(o*S + k - pad, 0, n-1)] += tap[k]
    # (folds taps, stride-S subsampling, and the replication padding).
    def band(taps, n_in, n_out):
        A = np.zeros((n_out, n_in), np.float64)
        for o in range(n_out):
            base = o * S - pad
            for k, t in enumerate(taps):
                src = min(max(base + k, 0), n_in - 1)
                A[o, src] += t
        return A

    # dtype / precision policy: bf16 input -> bf16 operands + f32 accumulate
    # (MXU fast path); f32 input -> f32 operands at HIGHEST precision so the
    # H-long contraction matches the exact 9-tap convolution.
    if x.dtype == jnp.bfloat16:
        band_dtype = jnp.bfloat16
        precision = jax.lax.Precision.DEFAULT
    else:
        band_dtype = jnp.float32
        precision = jax.lax.Precision.HIGHEST

    ah = jnp.asarray(band(tap_h, H, HO), dtype=band_dtype)       # (HO, H)
    awt = jnp.asarray(band(tap_w, W, WO).T, dtype=band_dtype)    # (W, WO)

    # Raw input, read from HBM exactly once (no pad, no space-to-depth).
    x_nc = x.reshape(N * C, H, W)
    NC = N * C

    # --- plane-block / grid selection ---------------------------------------
    itemsize = np.dtype(x.dtype).itemsize
    plane_bytes = H * W * itemsize
    max_b_budget = max(1, int(plane_block_bytes) // plane_bytes)
    min_steps = 4                                   # keep the pipeline + megacore busy
    max_b_steps = NC // min_steps if NC >= min_steps else 1
    B = int(max(1, min(max_b_budget, max_b_steps)))
    grid_n = int(pl.cdiv(NC, B))
    # TODO(synk): for large frames (H ~ 2K-4K) the dense (HO, H) band alone approaches
    # v7x's 64 MiB VMEM and inflates FLOPs by ~H/KH; add an HO-row-block grid axis
    # streaming (tile_HO, tile_HO*S + KH - 1) band slices plus the input row halo.

    flatten_out = WO < 128
    out_dtype = x.dtype

    if flatten_out:
        # Lane-dense store: one (B, HO*WO) slab per step instead of B narrow stores.
        out_shape = jax.ShapeDtypeStruct((grid_n, B, HO * WO), out_dtype)
        out_spec = pl.BlockSpec((None, B, HO * WO), lambda i: (i, 0, 0))
    else:
        out_shape = jax.ShapeDtypeStruct((NC, HO, WO), out_dtype)
        out_spec = pl.BlockSpec((B, HO, WO), lambda i: (i, 0, 0))

    in_specs = [
        pl.BlockSpec((HO, H), lambda i: (0, 0)),        # A_h   (VMEM-resident)
        pl.BlockSpec((W, WO), lambda i: (0, 0)),        # A_w^T (VMEM-resident)
        pl.BlockSpec((B, H, W), lambda i: (i, 0, 0)),   # B input planes per step
    ]

    # Explicit VMEM budget: 2x double-buffered in/out blocks + resident bands
    # + f32 intermediate, clamped to stay safe on v7x's 64 MiB physical VMEM.
    in_blk = B * plane_bytes
    out_blk = B * HO * WO * np.dtype(out_dtype).itemsize
    band_bytes = (HO * H + W * WO) * np.dtype(band_dtype).itemsize
    t_bytes = B * H * WO * 4
    vmem_need = 2 * (in_blk + out_blk) + 2 * band_bytes + 2 * t_bytes + (2 << 20)
    vmem_limit = int(min(max(vmem_need, 16 << 20), 48 << 20))

    out = pl.pallas_call(
        partial(_downsampler_kernel, precision=precision, flatten_out=flatten_out),
        out_shape=out_shape,
        grid=(grid_n,),
        in_specs=in_specs,
        out_specs=out_spec,
        compiler_params=pltpu.CompilerParams(
            dimension_semantics=("parallel",),          # planes independent
            vmem_limit_bytes=vmem_limit),
    )(ah, awt, x_nc)

    if flatten_out:
        out = out.reshape(grid_n * B, HO * WO)[:NC].reshape(N, C, HO, WO)
    else:
        out = out.reshape(N, C, HO, WO)

    # Conv2d bias is zero at init -> skipped; otherwise it is a per-channel
    # constant, added once on the (factor^2-smaller) output in the wrapper.
    if bias is not None:
        add_bias = True
        try:
            add_bias = bool(np.any(np.asarray(bias)))
        except Exception:                     # traced / abstract bias -> keep the add
            add_bias = True
        if add_bias:
            out = out + jnp.asarray(bias, out.dtype).reshape(1, C, 1, 1)
    return out


# ---------------------------------------------------------------------------
# Pure-JAX reference (mirrors nn.Conv2d diagonal weight + ReplicationPad2d)
# ---------------------------------------------------------------------------
def ref_forward(x, kernel2d, factor, preserve_size=True):
    N, C, H, W = x.shape
    KH, KW = kernel2d.shape
    if preserve_size:
        pad = (KH - 1) // 2 if KH % 2 == 1 else (KH - factor) // 2
        xp = jnp.pad(x, ((0, 0), (0, 0), (pad, pad), (pad, pad)), mode='edge')
    else:
        xp = x
    w = jnp.zeros((C, C, KH, KW), jnp.float32)
    w = w.at[jnp.arange(C), jnp.arange(C)].set(jnp.asarray(kernel2d, jnp.float32))
    return jax.lax.conv_general_dilated(
        xp, w, (factor, factor), 'VALID',
        dimension_numbers=('NCHW', 'OIHW', 'NCHW'),
        precision=jax.lax.Precision.HIGHEST)


if __name__ == "__main__":
    # Module config: Downsampler(n_planes=4, factor=2, kernel_type='lanczos2',
    #                            phase=0, preserve_size=True)
    n_planes, factor, phase = 4, 2, 0
    support = 2
    kernel_width = 4 * factor + 1           # lanczos2 -> 9
    k_np = get_kernel(factor, 'lanczos', phase, kernel_width, support=support)

    key = jax.random.PRNGKey(0)
    x = jax.random.normal(key, (2, n_planes, 16, 16), dtype=jnp.float32)

    kernel2d = jnp.asarray(k_np, dtype=jnp.float32)
    bias = jnp.zeros((n_planes,), jnp.float32)   # Conv2d bias initialized to 0

    out = downsampler_forward(x, kernel2d, bias, factor, preserve_size=True)
    out = jax.block_until_ready(out)

    ref = jax.block_until_ready(ref_forward(x, kernel2d, factor, preserve_size=True))
    assert out.shape == (2, n_planes, 16 // factor, 16 // factor), out.shape
    np.testing.assert_allclose(np.asarray(out), np.asarray(ref), rtol=1e-4, atol=1e-4)

    print("KERNEL_OK")
</pallas_src>

<mosaic_0001>
module attributes {stable_mosaic.version = 11 : i64} {
  func.func @_downsampler_kernel(%arg0: i32, %arg1: memref<8x16xf32, #tpu.memory_space<vmem>>, %arg2: memref<16x8xf32, #tpu.memory_space<vmem>>, %arg3: memref<2x16x16xf32, #tpu.memory_space<vmem>>, %arg4: memref<1x2x64xf32, #tpu.memory_space<vmem>>) attributes {dimension_semantics = [#tpu.dimension_semantics<parallel>], iteration_bounds = array<i64: 4>, scalar_prefetch = 0 : i64, scratch_operands = 0 : i64, tpu.core_type = #tpu.core_type<tc>, window_params = [{pipeline_mode = #tpu.pipeline_mode<synchronous>, transform_indices = @transform_0, window_bounds = array<i64: 8, 16>}, {pipeline_mode = #tpu.pipeline_mode<synchronous>, transform_indices = @transform_1, window_bounds = array<i64: 16, 8>}, {transform_indices = @transform_2, window_bounds = array<i64: 2, 16, 16>}, {transform_indices = @transform_3, window_bounds = array<i64: 1, 2, 64>}]} {
    %c0 = arith.constant 0 : index
    %c0_0 = arith.constant 0 : index
    %0 = vector.load %arg1[%c0, %c0_0] : memref<8x16xf32, #tpu.memory_space<vmem>>, vector<8x16xf32>
    %c0_1 = arith.constant 0 : index
    %c0_2 = arith.constant 0 : index
    %1 = vector.load %arg2[%c0_1, %c0_2] : memref<16x8xf32, #tpu.memory_space<vmem>>, vector<16x8xf32>
    %c0_3 = arith.constant 0 : index
    %c0_4 = arith.constant 0 : index
    %c0_5 = arith.constant 0 : index
    %2 = vector.load %arg3[%c0_3, %c0_4, %c0_5] : memref<2x16x16xf32, #tpu.memory_space<vmem>>, vector<2x16x16xf32>
    %3 = vector.shape_cast %2 : vector<2x16x16xf32> to vector<32x16xf32>
    %cst = arith.constant dense<0.000000e+00> : vector<32x8xf32>
    %4 = tpu.matmul %3, %1, %cst {dimension_numbers = #tpu.dot_dimension_numbers<[1], [0], [0], [1], [0, 0, 1, 1], [], []>, precision = #tpu.contract_precision<fp32>} : vector<32x16xf32>, vector<16x8xf32>, vector<32x8xf32> -> vector<32x8xf32>
    %5 = vector.shape_cast %4 : vector<32x8xf32> to vector<2x16x8xf32>
    %6 = tpu.transpose %5, [1, 0, 2] : vector<2x16x8xf32> -> vector<16x2x8xf32>
    %7 = vector.shape_cast %6 : vector<16x2x8xf32> to vector<16x16xf32>
    %cst_6 = arith.constant dense<0.000000e+00> : vector<8x16xf32>
    %8 = tpu.matmul %0, %7, %cst_6 {dimension_numbers = #tpu.dot_dimension_numbers<[1], [0], [0], [1], [0, 0, 1, 1], [], []>, precision = #tpu.contract_precision<fp32>} : vector<8x16xf32>, vector<16x16xf32>, vector<8x16xf32> -> vector<8x16xf32>
    %9 = vector.shape_cast %8 : vector<8x16xf32> to vector<8x2x8xf32>
    %10 = tpu.transpose %9, [1, 0, 2] : vector<8x2x8xf32> -> vector<2x8x8xf32>
    %11 = vector.shape_cast %10 : vector<2x8x8xf32> to vector<2x64xf32>
    %c0_7 = arith.constant 0 : index
    %c0_8 = arith.constant 0 : index
    %c0_9 = arith.constant 0 : index
    %12 = vector.load %arg4[%c0_7, %c0_8, %c0_9] : memref<1x2x64xf32, #tpu.memory_space<vmem>>, vector<1x2x64xf32>
    %13 = vector.shape_cast %12 : vector<1x2x64xf32> to vector<2x64xf32>
    %14 = vector.shape_cast %11 : vector<2x64xf32> to vector<1x2x64xf32>
    tpu.vector_store %arg4[%c0_7, %c0_8, %c0_9], %14 {strides = array<i32>} : memref<1x2x64xf32, #tpu.memory_space<vmem>>, vector<1x2x64xf32>,
    return
  }
  func.func @transform_0(%arg0: i32) -> (i32, i32) {
    %c0_i32 = arith.constant 0 : i32
    %c0_i32_0 = arith.constant 0 : i32
    %c0_i32_1 = arith.constant 0 : i32
    return %c0_i32, %c0_i32_0 : i32, i32
  }
  func.func @transform_1(%arg0: i32) -> (i32, i32) {
    %c0_i32 = arith.constant 0 : i32
    %c0_i32_0 = arith.constant 0 : i32
    %c0_i32_1 = arith.constant 0 : i32
    return %c0_i32, %c0_i32_0 : i32, i32
  }
  func.func @transform_2(%arg0: i32) -> (i32, i32, i32) {
    %c0_i32 = arith.constant 0 : i32
    %c0_i32_0 = arith.constant 0 : i32
    %c0_i32_1 = arith.constant 0 : i32
    return %arg0, %c0_i32, %c0_i32_0 : i32, i32, i32
  }
  func.func @transform_3(%arg0: i32) -> (i32, i32, i32) {
    %c0_i32 = arith.constant 0 : i32
    %c0_i32_0 = arith.constant 0 : i32
    %c0_i32_1 = arith.constant 0 : i32
    return %arg0, %c0_i32, %c0_i32_0 : i32, i32, i32
  }
}

</mosaic_0001>

<llo_original>
// kernel: tpu_custom_call.1
$region0: #{tpu_custom_call.1}
  #allocation0 [shape = 'u32[]', space=smem, size = 0x4, offset = 0x4, fixed_abs, tag = 'smem constant byte address 0x4 - core index']
  #allocation1 [shape = 'u32[72,128]{1,0:T(1,128)}', space=vmem, size = 0x9000, scoped, tag = 'internal scratch']
  %s0 = inlined_call_operand.vmem [shape: f32[8,16], index: 0, kind: input, shape index: {}]
  %s1 = inlined_call_operand.vmem [shape: f32[16,8], index: 1, kind: input, shape index: {}]
  %s2 = inlined_call_operand.hbm [shape: f32[8,16,16], index: 2, kind: input, shape index: {}]
  %s3 = inlined_call_operand.hbm [shape: f32[4,2,64], index: 3, kind: output, shape index: {}]
  %s4 = sld [smem:[#allocation0]]
  $region49: #{tpu_custom_call.1} parent=0
    _
  %s6 = ssub.s32 1, %s4
  %s7 = scalar_select 0, %s6, %s4
  $region1: #{tpu_custom_call.1} parent=0
    #allocation2 [shape = 'u8[32768]{0}', space=vmem, size = 0x8000, scoped, tag = 'input window, operand 2']
    #allocation3 [shape = 's32[2]{0}', space=sflag, size = 0x8, scoped, tag = 'scoped memory for tpu_custom_call.1']
    #allocation4 [shape = 's32[2]{0}', space=sflag, size = 0x8, scoped, tag = 'scoped memory for tpu_custom_call.1']
    #allocation5 [shape = 'u8[2048]{0}', space=vmem, size = 0x800, scoped, tag = 'output window, operand 0']
    %8 = vsyncpa [#allocation3], 0
    %s9 = scalar_lea.sflag [#allocation3], 1
    %10 = vsyncpa %s9, 0
    %11 = vsyncpa [#allocation4], 0
    %s12 = scalar_lea.sflag [#allocation4], 1
    %13 = vsyncpa %s12, 0
    loop: start=0, step=1, limit=6
    $region2: #{tpu_custom_call.1} parent=1 // loop_pre_header
      _
    $region3: #{tpu_custom_call.1} parent=1 // loop_header
      %s15 = sphi 0, %s19
      %p16 = scmp.ge.s32.totalorder %s15, 6
      %s23 = sphi 0, %s23
      %s25 = sphi 0, %s23
      %s26 = sphi 0, %s25
      %s40 = sphi 0, %s26
      %s44 = sphi 0, %s44
      %s46 = sphi 0, %s44
      %s47 = sphi 0, %s46
      %s61 = sphi 0, %s47
      %s67 = sphi 0, %s69
      %s70 = sphi 0, %s67
      %s71 = sphi 0, %s70
      %s87 = sphi 0, %s71
      %s93 = sphi 0, %s95
      %s96 = sphi 0, %s93
      %s97 = sphi 0, %s96
      %s113 = sphi 0, %s97
    $region4: #{tpu_custom_call.1} parent=1 // loop_header_branch
      %18 = sbr.rel (%p16) target = $region8
    $region5: #{tpu_custom_call.1} parent=1 // loop_body
      %s20 = ssub.s32 %s15, 1
      %s21 = ssub.s32 %s15, 2
      %s22 = sadd.s32 %s15, 1
      %s24 = sadd.s32 %s23, 1
      %p27 = scmp.eq.s32.totalorder %s15, 3
      %p28 = scmp.ne.s32.totalorder %s23, %s25
      %p29 = scmp.eq.s32.totalorder %s15, 0
      %p30 = por %p28, %p29
      %p31 = scmp.ne.s32.totalorder %s23, %s25
      %p32 = scmp.eq.s32.totalorder %s20, 3
      %p33 = por %p31, %p32
      %p34 = scmp.ne.s32.totalorder %s25, %s26
      %p35 = scmp.eq.s32.totalorder %s20, 0
      %p36 = por %p34, %p35
      %p37 = scmp.ne.s32.totalorder %s25, %s26
      %p38 = scmp.eq.s32.totalorder %s21, 3
      %p39 = por %p37, %p38
      %p41 = scmp.ne.s32.totalorder %s26, %s40
      %p42 = scmp.eq.s32.totalorder %s21, 0
      %p43 = por %p41, %p42
      %s45 = sadd.s32 %s44, 1
      %p48 = scmp.eq.s32.totalorder %s15, 3
      %p49 = scmp.ne.s32.totalorder %s44, %s46
      %p50 = scmp.eq.s32.totalorder %s15, 0
      %p51 = por %p49, %p50
      %p52 = scmp.ne.s32.totalorder %s44, %s46
      %p53 = scmp.eq.s32.totalorder %s20, 3
      %p54 = por %p52, %p53
      %p55 = scmp.ne.s32.totalorder %s46, %s47
      %p56 = scmp.eq.s32.totalorder %s20, 0
      %p57 = por %p55, %p56
      %p58 = scmp.ne.s32.totalorder %s46, %s47
      %p59 = scmp.eq.s32.totalorder %s21, 3
      %p60 = por %p58, %p59
      %p62 = scmp.ne.s32.totalorder %s47, %s61
      %p63 = scmp.eq.s32.totalorder %s21, 0
      %p64 = por %p62, %p63
      %s65 = ssub.s32 %s15, %s22
      %p66 = scmp.eq.s32.totalorder %s65, 0
      %s68 = sadd.s32 %s67, 1
      %s69 = scalar_select %p66, %s67, %s68
      %p72 = pneg %p66
      %p73 = scmp.eq.s32.totalorder %s15, 3
      %p74 = por %p72, %p73
      %p75 = scmp.ne.s32.totalorder %s67, %s70
      %p76 = scmp.eq.s32.totalorder %s15, 0
      %p77 = por %p75, %p76
      %p78 = scmp.ne.s32.totalorder %s67, %s70
      %p79 = scmp.eq.s32.totalorder %s20, 3
      %p80 = por %p78, %p79
      %p81 = scmp.ne.s32.totalorder %s70, %s71
      %p82 = scmp.eq.s32.totalorder %s20, 0
      %p83 = por %p81, %p82
      %p84 = scmp.ne.s32.totalorder %s70, %s71
      %p85 = scmp.eq.s32.totalorder %s21, 3
      %p86 = por %p84, %p85
      %p88 = scmp.ne.s32.totalorder %s71, %s87
      %p89 = scmp.eq.s32.totalorder %s21, 0
      %p90 = por %p88, %p89
      %s91 = ssub.s32 %s15, %s22
      %p92 = scmp.eq.s32.totalorder %s91, 0
      %s94 = sadd.s32 %s93, 1
      %s95 = scalar_select %p92, %s93, %s94
      %p98 = pneg %p92
      %p99 = scmp.eq.s32.totalorder %s15, 3
      %p100 = por %p98, %p99
      %p101 = scmp.ne.s32.totalorder %s93, %s96
      %p102 = scmp.eq.s32.totalorder %s15, 0
      %p103 = por %p101, %p102
      %p104 = scmp.ne.s32.totalorder %s93, %s96
      %p105 = scmp.eq.s32.totalorder %s20, 3
      %p106 = por %p104, %p105
      %p107 = scmp.ne.s32.totalorder %s96, %s97
      %p108 = scmp.eq.s32.totalorder %s20, 0
      %p109 = por %p107, %p108
      %p110 = scmp.ne.s32.totalorder %s96, %s97
      %p111 = scmp.eq.s32.totalorder %s21, 3
      %p112 = por %p110, %p111
      %p114 = scmp.ne.s32.totalorder %s97, %s113
      %p115 = scmp.eq.s32.totalorder %s21, 0
      %p116 = por %p114, %p115
      %p117 = scmp.le.s32.totalorder 1, %s15
      %p118 = scmp.lt.s32.totalorder %s15, 5
      %p119 = pnand %p117, %p118
      %p120 = pneg %p119
      // Predicated region
      $region9: #{tpu_custom_call.1} parent=5 // pred_check
        _
      $region10: #{tpu_custom_call.1} parent=5 // pred_check_branch
        %122 = sbr.rel (%p119) target = $region12
      $region11: #{tpu_custom_call.1} parent=5 // pred_region
        %s123 = ssub.s32 %s15, 1
        // Predicated region
        $region13: #{tpu_custom_call.1} parent=11 // pred_check
          %p124 = pneg %p36
        $region14: #{tpu_custom_call.1} parent=11 // pred_check_branch
          %126 = sbr.rel (%p124) target = $region16
        $region15: #{tpu_custom_call.1} parent=11 // pred_region
          _
        $region16: #{tpu_custom_call.1} parent=11 // pred_fallthru
          _
        // Predicated region
        $region17: #{tpu_custom_call.1} parent=11 // pred_check
          %p127 = pneg %p57
        $region18: #{tpu_custom_call.1} parent=11 // pred_check_branch
          %129 = sbr.rel (%p127) target = $region20
        $region19: #{tpu_custom_call.1} parent=11 // pred_region
          _
        $region20: #{tpu_custom_call.1} parent=11 // pred_fallthru
          _
      $region12: #{tpu_custom_call.1} parent=5 // pred_fallthru
        _
      %p130 = scmp.lt.s32.totalorder %s15, 4
      // Predicated region
      $region21: #{tpu_custom_call.1} parent=5 // pred_check
        %p131 = pneg %p130
      $region22: #{tpu_custom_call.1} parent=5 // pred_check_branch
        %133 = sbr.rel (%p131) target = $region24
      $region23: #{tpu_custom_call.1} parent=5 // pred_region
        // Predicated region
        $region25: #{tpu_custom_call.1} parent=23 // pred_check
          %p134 = pneg %p77
        $region26: #{tpu_custom_call.1} parent=23 // pred_check_branch
          %136 = sbr.rel (%p134) target = $region28
        $region27: #{tpu_custom_call.1} parent=23 // pred_region
          %s137 = sand.u32 %s67, 1
          %s138 = scalar_lea.sflag [#allocation3], %s137
          %s139 = sand.u32 %s67, 1
          %s140 = smul.addr %s139, 32
          %s141 = scalar_lea.vmem [#allocation2], %s140
          %s142 = smul.u32 2, %s15
          %144 = vsyncadd %s138, 0
          %s145 = smul.addr %s142, 2
          %s146 = smul.addr %s145, 8
          %s147 = scalar_lea.hbm %s2, %s146
          %s148 = sshll.u32 %s147, 4
          %s149 = int_to_ptr.hbm [resolvable:$true] %s148
          %s150 = sshll.u32 %s141, 4
          %s151 = int_to_ptr.vmem [resolvable:$true] %s150
          %156 = dma.hbm_to_vmem [thread:$0]  %s149, 512, %s151, %s138, 128, 128, 8
        $region28: #{tpu_custom_call.1} parent=23 // pred_fallthru
          _
      $region24: #{tpu_custom_call.1} parent=5 // pred_fallthru
        _
      %p157 = scmp.le.s32.totalorder 1, %s15
      %p158 = scmp.lt.s32.totalorder %s15, 5
      %p159 = pnand %p157, %p158
      %p160 = pneg %p159
      // Predicated region
      $region29: #{tpu_custom_call.1} parent=5 // pred_check
        _
      $region30: #{tpu_custom_call.1} parent=5 // pred_check_branch
        %162 = sbr.rel (%p159) target = $region32
      $region31: #{tpu_custom_call.1} parent=5 // pred_region
        %s163 = ssub.s32 %s15, 1
        %s164 = sand.u32 %s70, 1
        %s165 = scalar_lea.sflag [#allocation3], %s164
        %s166 = sand.u32 %s70, 1
        %s167 = smul.addr %s166, 32
        %s168 = scalar_lea.vmem [#allocation2], %s167
        // Predicated region
        $region33: #{tpu_custom_call.1} parent=31 // pred_check
          %p169 = pneg %p83
        $region34: #{tpu_custom_call.1} parent=31 // pred_check_branch
          %171 = sbr.rel (%p169) target = $region36
        $region35: #{tpu_custom_call.1} parent=31 // pred_region
          %173 = dma.done %s165, 512
        $region36: #{tpu_custom_call.1} parent=31 // pred_fallthru
          _
        %p174 = pneg %p36
        %p175 = pneg %p33
        %p176 = pneg %p57
        %p177 = pneg %p54
        %s178 = sand.u32 %s70, 1
        %s179 = scalar_lea.sflag [#allocation3], %s178
        %s180 = sand.u32 %s70, 1
        %s181 = smul.addr %s180, 32
        %s182 = scalar_lea.vmem [#allocation2], %s181
        %p183 = pneg %p83
        %p184 = pneg %p80
        %p185 = pneg %p109
        %p186 = pneg %p106
        %s187 = sand.u32 %s96, 1
        %s188 = scalar_lea.sflag [#allocation4], %s187
        %s189 = sand.u32 %s96, 1
        %s190 = smul.addr %s189, 2
        %s191 = scalar_lea.vmem [#allocation5], %s190
        %s192 = smul.u32 2, %s20
        %v193 = vld [vmem:[%s0] sm:$0xff]
        %v194 = vld [vmem:[%s1] sm:$0xff]
        %v195 = vld [vmem:[%s1 + $0x8] sm:$0xff]
        %v196 = vld [vmem:[%s168] sm:$0xff]
        %v197 = vld [vmem:[%s168 + $0x8] sm:$0xff]
        %v198 = vld [vmem:[%s168 + $0x10] sm:$0xff]
        %v199 = vld [vmem:[%s168 + $0x18] sm:$0xff]
        %vm200 = vcmask 130048
        %v202 = vsel %vm200, %v196, 0
        %v205 = vsel %vm200, %v197, 0
        %v208 = vsel %vm200, %v198, 0
        %v211 = vsel %vm200, %v199, 0
        %213 = vmatpush.msra.mxu0 0.0
        %214 = vmatpush.msra.mxu0 0.0
        %215 = vmatpush.msra.mxu0 0.0
        %216 = vmatpush.msra.mxu0 0.0
        %217 = vmatpush.msra.mxu0 0.0
        %218 = vmatpush.msra.mxu0 0.0
        %219 = vmatpush.msra.mxu0 0.0
        %220 = vmatpush.msra.mxu0 0.0
        %221 = vmatpush.msra.mxu0 0.0
        %222 = vmatpush.msra.mxu0 0.0
        %223 = vmatpush.msra.mxu0 0.0
        %224 = vmatpush.msra.mxu0 0.0
        %225 = vmatpush.msra.mxu0 0.0
        %226 = vmatpush.msra.mxu0 0.0
        %v227 = vand.u32 %v195, 4294901760
        %228 = vmatpush.msra.mxu0 %v227
        %v229 = vand.u32 %v194, 4294901760
        %230 = vmatpush.msra.mxu0 %v229
        %v231 = vand.u32 %v202, 4294901760
        %v232 = vsub.f32 %v202, %v231
        %v233 = vand.u32 %v232, 4294901760
        %v234 = vsub.f32 %v232, %v233
        %v235 = vand.u32 %v234, 4294901760
        %236 = vmatmul.f32.gmra.mxu0 %v235
        %v237 = vpop.f32.mrf.mxu0
        %v238 = vadd.f32 0.0, %v237
        %v239 = vand.u32 %v205, 4294901760
        %v240 = vsub.f32 %v205, %v239
        %v241 = vand.u32 %v240, 4294901760
        %v242 = vsub.f32 %v240, %v241
        %v243 = vand.u32 %v242, 4294901760
        %244 = vmatmul.f32.gmra.mxu0 %v243
        %v245 = vpop.f32.mrf.mxu0
        %v246 = vadd.f32 0.0, %v245
        %v247 = vand.u32 %v208, 4294901760
        %v248 = vsub.f32 %v208, %v247
        %v249 = vand.u32 %v248, 4294901760
        %v250 = vsub.f32 %v248, %v249
        %v251 = vand.u32 %v250, 4294901760
        %252 = vmatmul.f32.gmra.mxu0 %v251
        %v253 = vpop.f32.mrf.mxu0
        %v254 = vadd.f32 0.0, %v253
        %v255 = vand.u32 %v211, 4294901760
        %v256 = vsub.f32 %v211, %v255
        %v257 = vand.u32 %v256, 4294901760
        %v258 = vsub.f32 %v256, %v257
        %v259 = vand.u32 %v258, 4294901760
        %260 = vmatmul.f32.gmra.mxu0 %v259
        %v261 = vpop.f32.mrf.mxu0
        %v262 = vadd.f32 0.0, %v261
        %263 = vdwg.mxu0
        %264 = vmatpush.msra.mxu0 0.0
        %265 = vmatpush.msra.mxu0 0.0
        %266 = vmatpush.msra.mxu0 0.0
        %267 = vmatpush.msra.mxu0 0.0
        %268 = vmatpush.msra.mxu0 0.0
        %269 = vmatpush.msra.mxu0 0.0
        %270 = vmatpush.msra.mxu0 0.0
        %271 = vmatpush.msra.mxu0 0.0
        %272 = vmatpush.msra.mxu0 0.0
        %273 = vmatpush.msra.mxu0 0.0
        %274 = vmatpush.msra.mxu0 0.0
        %275 = vmatpush.msra.mxu0 0.0
        %276 = vmatpush.msra.mxu0 0.0
        %277 = vmatpush.msra.mxu0 0.0
        %v278 = vand.u32 %v195, 4294901760
        %v279 = vsub.f32 %v195, %v278
        %v280 = vand.u32 %v279, 4294901760
        %v281 = vsub.f32 %v279, %v280
        %v282 = vand.u32 %v281, 4294901760
        %283 = vmatpush.msra.mxu0 %v282
        %v284 = vand.u32 %v194, 4294901760
        %v285 = vsub.f32 %v194, %v284
        %v286 = vand.u32 %v285, 4294901760
        %v287 = vsub.f32 %v285, %v286
        %v288 = vand.u32 %v287, 4294901760
        %289 = vmatpush.msra.mxu0 %v288
        %v290 = vand.u32 %v202, 4294901760
        %291 = vmatmul.f32.gmra.mxu0 %v290
        %v292 = vpop.f32.mrf.mxu0
        %v293 = vadd.f32 %v238, %v292
        %v294 = vand.u32 %v205, 4294901760
        %295 = vmatmul.f32.gmra.mxu0 %v294
        %v296 = vpop.f32.mrf.mxu0
        %v297 = vadd.f32 %v246, %v296
        %v298 = vand.u32 %v208, 4294901760
        %299 = vmatmul.f32.gmra.mxu0 %v298
        %v300 = vpop.f32.mrf.mxu0
        %v301 = vadd.f32 %v254, %v300
        %v302 = vand.u32 %v211, 4294901760
        %303 = vmatmul.f32.gmra.mxu0 %v302
        %v304 = vpop.f32.mrf.mxu0
        %v305 = vadd.f32 %v262, %v304
        %306 = vdwg.mxu0
        %307 = vmatpush.msra.mxu0 0.0
        %308 = vmatpush.msra.mxu0 0.0
        %309 = vmatpush.msra.mxu0 0.0
        %310 = vmatpush.msra.mxu0 0.0
        %311 = vmatpush.msra.mxu0 0.0
        %312 = vmatpush.msra.mxu0 0.0
        %313 = vmatpush.msra.mxu0 0.0
        %314 = vmatpush.msra.mxu0 0.0
        %315 = vmatpush.msra.mxu0 0.0
        %316 = vmatpush.msra.mxu0 0.0
        %317 = vmatpush.msra.mxu0 0.0
        %318 = vmatpush.msra.mxu0 0.0
        %319 = vmatpush.msra.mxu0 0.0
        %320 = vmatpush.msra.mxu0 0.0
        %v321 = vand.u32 %v195, 4294901760
        %v322 = vsub.f32 %v195, %v321
        %323 = vmatpush.msra.mxu0 %v322
        %v324 = vand.u32 %v194, 4294901760
        %v325 = vsub.f32 %v194, %v324
        %326 = vmatpush.msra.mxu0 %v325
        %v327 = vand.u32 %v202, 4294901760
        %v328 = vsub.f32 %v202, %v327
        %329 = vmatmul.f32.gmra.mxu0 %v328
        %v330 = vpop.f32.mrf.mxu0
        %v331 = vadd.f32 %v293, %v330
        %v332 = vand.u32 %v205, 4294901760
        %v333 = vsub.f32 %v205, %v332
        %334 = vmatmul.f32.gmra.mxu0 %v333
        %v335 = vpop.f32.mrf.mxu0
        %v336 = vadd.f32 %v297, %v335
        %v337 = vand.u32 %v208, 4294901760
        %v338 = vsub.f32 %v208, %v337
        %339 = vmatmul.f32.gmra.mxu0 %v338
        %v340 = vpop.f32.mrf.mxu0
        %v341 = vadd.f32 %v301, %v340
        %v342 = vand.u32 %v211, 4294901760
        %v343 = vsub.f32 %v211, %v342
        %344 = vmatmul.f32.gmra.mxu0 %v343
        %v345 = vpop.f32.mrf.mxu0
        %v346 = vadd.f32 %v305, %v345
        %347 = vdwg.mxu0
        %348 = vmatpush.msra.mxu0 0.0
        %349 = vmatpush.msra.mxu0 0.0
        %350 = vmatpush.msra.mxu0 0.0
        %351 = vmatpush.msra.mxu0 0.0
        %352 = vmatpush.msra.mxu0 0.0
        %353 = vmatpush.msra.mxu0 0.0
        %354 = vmatpush.msra.mxu0 0.0
        %355 = vmatpush.msra.mxu0 0.0
        %356 = vmatpush.msra.mxu0 0.0
        %357 = vmatpush.msra.mxu0 0.0
        %358 = vmatpush.msra.mxu0 0.0
        %359 = vmatpush.msra.mxu0 0.0
        %360 = vmatpush.msra.mxu0 0.0
        %361 = vmatpush.msra.mxu0 0.0
        %v362 = vand.u32 %v195, 4294901760
        %363 = vmatpush.msra.mxu0 %v362
        %v364 = vand.u32 %v194, 4294901760
        %365 = vmatpush.msra.mxu0 %v364
        %v366 = vand.u32 %v202, 4294901760
        %v367 = vsub.f32 %v202, %v366
        %v368 = vand.u32 %v367, 4294901760
        %369 = vmatmul.f32.gmra.mxu0 %v368
        %v370 = vpop.f32.mrf.mxu0
        %v371 = vadd.f32 %v331, %v370
        %v372 = vand.u32 %v205, 4294901760
        %v373 = vsub.f32 %v205, %v372
        %v374 = vand.u32 %v373, 4294901760
        %375 = vmatmul.f32.gmra.mxu0 %v374
        %v376 = vpop.f32.mrf.mxu0
        %v377 = vadd.f32 %v336, %v376
        %v378 = vand.u32 %v208, 4294901760
        %v379 = vsub.f32 %v208, %v378
        %v380 = vand.u32 %v379, 4294901760
        %381 = vmatmul.f32.gmra.mxu0 %v380
        %v382 = vpop.f32.mrf.mxu0
        %v383 = vadd.f32 %v341, %v382
        %v384 = vand.u32 %v211, 4294901760
        %v385 = vsub.f32 %v211, %v384
        %v386 = vand.u32 %v385, 4294901760
        %387 = vmatmul.f32.gmra.mxu0 %v386
        %v388 = vpop.f32.mrf.mxu0
        %v389 = vadd.f32 %v346, %v388
        %390 = vdwg.mxu0
        %391 = vmatpush.msra.mxu0 0.0
        %392 = vmatpush.msra.mxu0 0.0
        %393 = vmatpush.msra.mxu0 0.0
        %394 = vmatpush.msra.mxu0 0.0
        %395 = vmatpush.msra.mxu0 0.0
        %396 = vmatpush.msra.mxu0 0.0
        %397 = vmatpush.msra.mxu0 0.0
        %398 = vmatpush.msra.mxu0 0.0
        %399 = vmatpush.msra.mxu0 0.0
        %400 = vmatpush.msra.mxu0 0.0
        %401 = vmatpush.msra.mxu0 0.0
        %402 = vmatpush.msra.mxu0 0.0
        %403 = vmatpush.msra.mxu0 0.0
        %404 = vmatpush.msra.mxu0 0.0
        %v405 = vand.u32 %v195, 4294901760
        %v406 = vsub.f32 %v195, %v405
        %v407 = vand.u32 %v406, 4294901760
        %408 = vmatpush.msra.mxu0 %v407
        %v409 = vand.u32 %v194, 4294901760
        %v410 = vsub.f32 %v194, %v409
        %v411 = vand.u32 %v410, 4294901760
        %412 = vmatpush.msra.mxu0 %v411
        %v413 = vand.u32 %v202, 4294901760
        %414 = vmatmul.f32.gmra.mxu0 %v413
        %v415 = vpop.f32.mrf.mxu0
        %v416 = vadd.f32 %v371, %v415
        %v417 = vand.u32 %v205, 4294901760
        %418 = vmatmul.f32.gmra.mxu0 %v417
        %v419 = vpop.f32.mrf.mxu0
        %v420 = vadd.f32 %v377, %v419
        %v421 = vand.u32 %v208, 4294901760
        %422 = vmatmul.f32.gmra.mxu0 %v421
        %v423 = vpop.f32.mrf.mxu0
        %v424 = vadd.f32 %v383, %v423
        %v425 = vand.u32 %v211, 4294901760
        %426 = vmatmul.f32.gmra.mxu0 %v425
        %v427 = vpop.f32.mrf.mxu0
        %v428 = vadd.f32 %v389, %v427
        %429 = vdwg.mxu0
        %430 = vmatpush.msra.mxu0 0.0
        %431 = vmatpush.msra.mxu0 0.0
        %432 = vmatpush.msra.mxu0 0.0
        %433 = vmatpush.msra.mxu0 0.0
        %434 = vmatpush.msra.mxu0 0.0
        %435 = vmatpush.msra.mxu0 0.0
        %436 = vmatpush.msra.mxu0 0.0
        %437 = vmatpush.msra.mxu0 0.0
        %438 = vmatpush.msra.mxu0 0.0
        %439 = vmatpush.msra.mxu0 0.0
        %440 = vmatpush.msra.mxu0 0.0
        %441 = vmatpush.msra.mxu0 0.0
        %442 = vmatpush.msra.mxu0 0.0
        %443 = vmatpush.msra.mxu0 0.0
        %v444 = vand.u32 %v195, 4294901760
        %445 = vmatpush.msra.mxu0 %v444
        %v446 = vand.u32 %v194, 4294901760
        %447 = vmatpush.msra.mxu0 %v446
        %v448 = vand.u32 %v202, 4294901760
        %449 = vmatmul.f32.gmra.mxu0 %v448
        %v450 = vpop.f32.mrf.mxu0
        %v451 = vadd.f32 %v416, %v450
        %v452 = vand.u32 %v205, 4294901760
        %453 = vmatmul.f32.gmra.mxu0 %v452
        %v454 = vpop.f32.mrf.mxu0
        %v455 = vadd.f32 %v420, %v454
        %v456 = vand.u32 %v208, 4294901760
        %457 = vmatmul.f32.gmra.mxu0 %v456
        %v458 = vpop.f32.mrf.mxu0
        %v459 = vadd.f32 %v424, %v458
        %v460 = vand.u32 %v211, 4294901760
        %461 = vmatmul.f32.gmra.mxu0 %v460
        %v462 = vpop.f32.mrf.mxu0
        %v463 = vadd.f32 %v428, %v462
        %464 = vdwg.mxu0
        %v465 = vrot.slane %v451, 4
        %vm466 = vcmask 1047556
        %v467 = vsel %vm466, 0.0, %v465
        %v469 = vunpack.c.l.s4 1983009808
        %v470 = vunpack.c.0.s8 %v469
        %v471 = vperm.slane %v451, %v470
        %v473 = vunpack.c.l.s4 1983009808
        %v474 = vunpack.c.0.s8 %v473
        %v475 = vperm.slane %v467, %v474
        %v476 = vrot.slane %v459, 4
        %v477 = vsel %vm466, 0.0, %v476
        %v479 = vunpack.c.l.s4 1983009808
        %v480 = vunpack.c.0.s8 %v479
        %v481 = vperm.slane %v459, %v480
        %v483 = vunpack.c.l.s4 1983009808
        %v484 = vunpack.c.0.s8 %v483
        %v485 = vperm.slane %v477, %v484
        %v486 = vrot.slane %v481, 4
        %v487 = vsel %vm466, %v486, %v471
        %v488 = vrot.slane %v471, 4
        %v489 = vsel %vm466, %v481, %v488
        %v491 = vunpack.c.l.s4 1934713408
        %v492 = vunpack.c.0.s8 %v491
        %v493 = vperm.slane %v487, %v492
        %v495 = vunpack.c.l.s4 1934713408
        %v496 = vunpack.c.0.s8 %v495
        %v497 = vperm.slane %v489, %v496
        %v498 = vrot.slane %v485, 4
        %v499 = vsel %vm466, %v498, %v475
        %v500 = vrot.slane %v475, 4
        %v501 = vsel %vm466, %v485, %v500
        %v503 = vunpack.c.l.s4 1934713408
        %v504 = vunpack.c.0.s8 %v503
        %v505 = vperm.slane %v499, %v504
        %v507 = vunpack.c.l.s4 1934713408
        %v508 = vunpack.c.0.s8 %v507
        %v509 = vperm.slane %v501, %v508
        %v510 = vrot.slane %v493, 4
        %v511 = vsel %vm466, 0.0, %v510
        %v512 = vrot.slane %v497, 4
        %v513 = vsel %vm466, 0.0, %v512
        %v514 = vrot.slane %v505, 4
        %v515 = vsel %vm466, 0.0, %v514
        %v516 = vrot.slane %v509, 4
        %v517 = vsel %vm466, 0.0, %v516
        %v518 = vrot.slane %v455, 4
        %v519 = vsel %vm466, 0.0, %v518
        %v521 = vunpack.c.l.s4 1983009808
        %v522 = vunpack.c.0.s8 %v521
        %v523 = vperm.slane %v455, %v522
        %v525 = vunpack.c.l.s4 1983009808
        %v526 = vunpack.c.0.s8 %v525
        %v527 = vperm.slane %v519, %v526
        %v528 = vrot.slane %v463, 4
        %v529 = vsel %vm466, 0.0, %v528
        %v531 = vunpack.c.l.s4 1983009808
        %v532 = vunpack.c.0.s8 %v531
        %v533 = vperm.slane %v463, %v532
        %v535 = vunpack.c.l.s4 1983009808
        %v536 = vunpack.c.0.s8 %v535
        %v537 = vperm.slane %v529, %v536
        %v538 = vrot.slane %v533, 4
        %v539 = vsel %vm466, %v538, %v523
        %v540 = vrot.slane %v523, 4
        %v541 = vsel %vm466, %v533, %v540
        %v543 = vunpack.c.l.s4 1934713408
        %v544 = vunpack.c.0.s8 %v543
        %v545 = vperm.slane %v539, %v544
        %v547 = vunpack.c.l.s4 1934713408
        %v548 = vunpack.c.0.s8 %v547
        %v549 = vperm.slane %v541, %v548
        %v550 = vrot.slane %v537, 4
        %v551 = vsel %vm466, %v550, %v527
        %v552 = vrot.slane %v527, 4
        %v553 = vsel %vm466, %v537, %v552
        %v555 = vunpack.c.l.s4 1934713408
        %v556 = vunpack.c.0.s8 %v555
        %v557 = vperm.slane %v551, %v556
        %v559 = vunpack.c.l.s4 1934713408
        %v560 = vunpack.c.0.s8 %v559
        %v561 = vperm.slane %v553, %v560
        %v562 = vrot.slane %v545, 4
        %v563 = vsel %vm466, 0.0, %v562
        %v564 = vrot.slane %v549, 4
        %v565 = vsel %vm466, 0.0, %v564
        %v566 = vrot.slane %v557, 4
        %v567 = vsel %vm466, 0.0, %v566
        %v568 = vrot.slane %v561, 4
        %v569 = vsel %vm466, 0.0, %v568
        %v570 = vsel %vm466, %v512, %v493
        %v572 = vunpack.c.l.s4 1983009808
        %v573 = vunpack.c.0.s8 %v572
        %v574 = vperm.slane %v570, %v573
        %v575 = vrot.slane %v513, 4
        %v576 = vsel %vm466, %v575, %v511
        %v578 = vunpack.c.l.s4 1983009808
        %v579 = vunpack.c.0.s8 %v578
        %v580 = vperm.slane %v576, %v579
        %v581 = vsel %vm466, %v516, %v505
        %v583 = vunpack.c.l.s4 1983009808
        %v584 = vunpack.c.0.s8 %v583
        %v585 = vperm.slane %v581, %v584
        %v586 = vrot.slane %v517, 4
        %v587 = vsel %vm466, %v586, %v515
        %v589 = vunpack.c.l.s4 1983009808
        %v590 = vunpack.c.0.s8 %v589
        %v591 = vperm.slane %v587, %v590
        %v592 = vrot.slane %v580, 4
        %v593 = vsel %vm466, %v592, %v574
        %v595 = vunpack.c.l.s4 1934713408
        %v596 = vunpack.c.0.s8 %v595
        %v597 = vperm.slane %v593, %v596
        %v598 = vrot.slane %v591, 4
        %v599 = vsel %vm466, %v598, %v585
        %v601 = vunpack.c.l.s4 1934713408
        %v602 = vunpack.c.0.s8 %v601
        %v603 = vperm.slane %v599, %v602
        %v604 = vrot.slane %v603, 4
        %v605 = vsel %vm466, %v604, %v597
        %v606 = vrot.slane %v597, 4
        %v607 = vsel %vm466, %v603, %v606
        %v608 = vsel %vm466, %v564, %v545
        %v610 = vunpack.c.l.s4 1983009808
        %v611 = vunpack.c.0.s8 %v610
        %v612 = vperm.slane %v608, %v611
        %v613 = vrot.slane %v565, 4
        %v614 = vsel %vm466, %v613, %v563
        %v616 = vunpack.c.l.s4 1983009808
        %v617 = vunpack.c.0.s8 %v616
        %v618 = vperm.slane %v614, %v617
        %v619 = vsel %vm466, %v568, %v557
        %v621 = vunpack.c.l.s4 1983009808
        %v622 = vunpack.c.0.s8 %v621
        %v623 = vperm.slane %v619, %v622
        %v624 = vrot.slane %v569, 4
        %v625 = vsel %vm466, %v624, %v567
        %v627 = vunpack.c.l.s4 1983009808
        %v628 = vunpack.c.0.s8 %v627
        %v629 = vperm.slane %v625, %v628
        %v630 = vrot.slane %v618, 4
        %v631 = vsel %vm466, %v630, %v612
        %v633 = vunpack.c.l.s4 1934713408
        %v634 = vunpack.c.0.s8 %v633
        %v635 = vperm.slane %v631, %v634
        %v636 = vrot.slane %v629, 4
        %v637 = vsel %vm466, %v636, %v623
        %v639 = vunpack.c.l.s4 1934713408
        %v640 = vunpack.c.0.s8 %v639
        %v641 = vperm.slane %v637, %v640
        %v642 = vrot.slane %v641, 4
        %v643 = vsel %vm466, %v642, %v635
        %v644 = vrot.slane %v635, 4
        %v645 = vsel %vm466, %v641, %v644
        %648 = vrot.lane.b32.xlu0 %v607, 8
        %v649 = vpop.permute.xlu0 %648
        %650 = vrot.lane.b32.xlu0 %v645, 8
        %v651 = vpop.permute.xlu0 %650
        %vm654 = vcmask 64512
        %v655 = vsel %vm654, %v605, %v649
        %v656 = vsel %vm654, %v643, %v651
        %v658 = vsel %vm200, %v193, 0
        %660 = vmatpush.msra.mxu0 0.0
        %661 = vmatpush.msra.mxu0 0.0
        %662 = vmatpush.msra.mxu0 0.0
        %663 = vmatpush.msra.mxu0 0.0
        %664 = vmatpush.msra.mxu0 0.0
        %665 = vmatpush.msra.mxu0 0.0
        %666 = vmatpush.msra.mxu0 0.0
        %667 = vmatpush.msra.mxu0 0.0
        %668 = vmatpush.msra.mxu0 0.0
        %669 = vmatpush.msra.mxu0 0.0
        %670 = vmatpush.msra.mxu0 0.0
        %671 = vmatpush.msra.mxu0 0.0
        %672 = vmatpush.msra.mxu0 0.0
        %673 = vmatpush.msra.mxu0 0.0
        %v674 = vand.u32 %v656, 4294901760
        %675 = vmatpush.msra.mxu0 %v674
        %v676 = vand.u32 %v655, 4294901760
        %677 = vmatpush.msra.mxu0 %v676
        %v678 = vand.u32 %v658, 4294901760
        %v679 = vsub.f32 %v658, %v678
        %v680 = vand.u32 %v679, 4294901760
        %v681 = vsub.f32 %v679, %v680
        %v682 = vand.u32 %v681, 4294901760
        %683 = vmatmul.f32.gmra.mxu0 %v682
        %v684 = vpop.f32.mrf.mxu0
        %v685 = vadd.f32 0.0, %v684
        %686 = vdwg.mxu0
        %687 = vmatpush.msra.mxu0 0.0
        %688 = vmatpush.msra.mxu0 0.0
        %689 = vmatpush.msra.mxu0 0.0
        %690 = vmatpush.msra.mxu0 0.0
        %691 = vmatpush.msra.mxu0 0.0
        %692 = vmatpush.msra.mxu0 0.0
        %693 = vmatpush.msra.mxu0 0.0
        %694 = vmatpush.msra.mxu0 0.0
        %695 = vmatpush.msra.mxu0 0.0
        %696 = vmatpush.msra.mxu0 0.0
        %697 = vmatpush.msra.mxu0 0.0
        %698 = vmatpush.msra.mxu0 0.0
        %699 = vmatpush.msra.mxu0 0.0
        %700 = vmatpush.msra.mxu0 0.0
        %v701 = vand.u32 %v656, 4294901760
        %v702 = vsub.f32 %v656, %v701
        %v703 = vand.u32 %v702, 4294901760
        %v704 = vsub.f32 %v702, %v703
        %v705 = vand.u32 %v704, 4294901760
        %706 = vmatpush.msra.mxu0 %v705
        %v707 = vand.u32 %v655, 4294901760
        %v708 = vsub.f32 %v655, %v707
        %v709 = vand.u32 %v708, 4294901760
        %v710 = vsub.f32 %v708, %v709
        %v711 = vand.u32 %v710, 4294901760
        %712 = vmatpush.msra.mxu0 %v711
        %v713 = vand.u32 %v658, 4294901760
        %714 = vmatmul.f32.gmra.mxu0 %v713
        %v715 = vpop.f32.mrf.mxu0
        %v716 = vadd.f32 %v685, %v715
        %717 = vdwg.mxu0
        %718 = vmatpush.msra.mxu0 0.0
        %719 = vmatpush.msra.mxu0 0.0
        %720 = vmatpush.msra.mxu0 0.0
        %721 = vmatpush.msra.mxu0 0.0
        %722 = vmatpush.msra.mxu0 0.0
        %723 = vmatpush.msra.mxu0 0.0
        %724 = vmatpush.msra.mxu0 0.0
        %725 = vmatpush.msra.mxu0 0.0
        %726 = vmatpush.msra.mxu0 0.0
        %727 = vmatpush.msra.mxu0 0.0
        %728 = vmatpush.msra.mxu0 0.0
        %729 = vmatpush.msra.mxu0 0.0
        %730 = vmatpush.msra.mxu0 0.0
        %731 = vmatpush.msra.mxu0 0.0
        %v732 = vand.u32 %v656, 4294901760
        %v733 = vsub.f32 %v656, %v732
        %734 = vmatpush.msra.mxu0 %v733
        %v735 = vand.u32 %v655, 4294901760
        %v736 = vsub.f32 %v655, %v735
        %737 = vmatpush.msra.mxu0 %v736
        %v738 = vand.u32 %v658, 4294901760
        %v739 = vsub.f32 %v658, %v738
        %740 = vmatmul.f32.gmra.mxu0 %v739
        %v741 = vpop.f32.mrf.mxu0
        %v742 = vadd.f32 %v716, %v741
        %743 = vdwg.mxu0
        %744 = vmatpush.msra.mxu0 0.0
        %745 = vmatpush.msra.mxu0 0.0
        %746 = vmatpush.msra.mxu0 0.0
        %747 = vmatpush.msra.mxu0 0.0
        %748 = vmatpush.msra.mxu0 0.0
        %749 = vmatpush.msra.mxu0 0.0
        %750 = vmatpush.msra.mxu0 0.0
        %751 = vmatpush.msra.mxu0 0.0
        %752 = vmatpush.msra.mxu0 0.0
        %753 = vmatpush.msra.mxu0 0.0
        %754 = vmatpush.msra.mxu0 0.0
        %755 = vmatpush.msra.mxu0 0.0
        %756 = vmatpush.msra.mxu0 0.0
        %757 = vmatpush.msra.mxu0 0.0
        %v758 = vand.u32 %v656, 4294901760
        %759 = vmatpush.msra.mxu0 %v758
        %v760 = vand.u32 %v655, 4294901760
        %761 = vmatpush.msra.mxu0 %v760
        %v762 = vand.u32 %v658, 4294901760
        %v763 = vsub.f32 %v658, %v762
        %v764 = vand.u32 %v763, 4294901760
        %765 = vmatmul.f32.gmra.mxu0 %v764
        %v766 = vpop.f32.mrf.mxu0
        %v767 = vadd.f32 %v742, %v766
        %768 = vdwg.mxu0
        %769 = vmatpush.msra.mxu0 0.0
        %770 = vmatpush.msra.mxu0 0.0
        %771 = vmatpush.msra.mxu0 0.0
        %772 = vmatpush.msra.mxu0 0.0
        %773 = vmatpush.msra.mxu0 0.0
        %774 = vmatpush.msra.mxu0 0.0
        %775 = vmatpush.msra.mxu0 0.0
        %776 = vmatpush.msra.mxu0 0.0
        %777 = vmatpush.msra.mxu0 0.0
        %778 = vmatpush.msra.mxu0 0.0
        %779 = vmatpush.msra.mxu0 0.0
        %780 = vmatpush.msra.mxu0 0.0
        %781 = vmatpush.msra.mxu0 0.0
        %782 = vmatpush.msra.mxu0 0.0
        %v783 = vand.u32 %v656, 4294901760
        %v784 = vsub.f32 %v656, %v783
        %v785 = vand.u32 %v784, 4294901760
        %786 = vmatpush.msra.mxu0 %v785
        %v787 = vand.u32 %v655, 4294901760
        %v788 = vsub.f32 %v655, %v787
        %v789 = vand.u32 %v788, 4294901760
        %790 = vmatpush.msra.mxu0 %v789
        %v791 = vand.u32 %v658, 4294901760
        %792 = vmatmul.f32.gmra.mxu0 %v791
        %v793 = vpop.f32.mrf.mxu0
        %v794 = vadd.f32 %v767, %v793
        %795 = vdwg.mxu0
        %796 = vmatpush.msra.mxu0 0.0
        %797 = vmatpush.msra.mxu0 0.0
        %798 = vmatpush.msra.mxu0 0.0
        %799 = vmatpush.msra.mxu0 0.0
        %800 = vmatpush.msra.mxu0 0.0
        %801 = vmatpush.msra.mxu0 0.0
        %802 = vmatpush.msra.mxu0 0.0
        %803 = vmatpush.msra.mxu0 0.0
        %804 = vmatpush.msra.mxu0 0.0
        %805 = vmatpush.msra.mxu0 0.0
        %806 = vmatpush.msra.mxu0 0.0
        %807 = vmatpush.msra.mxu0 0.0
        %808 = vmatpush.msra.mxu0 0.0
        %809 = vmatpush.msra.mxu0 0.0
        %v810 = vand.u32 %v656, 4294901760
        %811 = vmatpush.msra.mxu0 %v810
        %v812 = vand.u32 %v655, 4294901760
        %813 = vmatpush.msra.mxu0 %v812
        %v814 = vand.u32 %v658, 4294901760
        %815 = vmatmul.f32.gmra.mxu0 %v814
        %v816 = vpop.f32.mrf.mxu0
        %v817 = vadd.f32 %v794, %v816
        %818 = vdwg.mxu0
        %820 = vrot.lane.b32.xlu0 %v817, 120
        %v821 = vpop.permute.xlu0 %820
        %v823 = vrot.slane %v817, 4
        %v824 = vsel %vm466, 0.0, %v823
        %v826 = vunpack.c.l.s4 1983009808
        %v827 = vunpack.c.0.s8 %v826
        %v828 = vperm.slane %v817, %v827
        %v830 = vunpack.c.l.s4 1983009808
        %v831 = vunpack.c.0.s8 %v830
        %v832 = vperm.slane %v824, %v831
        %v833 = vrot.slane %v821, 4
        %v834 = vsel %vm466, 0.0, %v833
        %v836 = vunpack.c.l.s4 1983009808
        %v837 = vunpack.c.0.s8 %v836
        %v838 = vperm.slane %v821, %v837
        %v840 = vunpack.c.l.s4 1983009808
        %v841 = vunpack.c.0.s8 %v840
        %v842 = vperm.slane %v834, %v841
        %v843 = vrot.slane %v838, 4
        %v844 = vsel %vm466, %v843, %v828
        %v845 = vrot.slane %v828, 4
        %v846 = vsel %vm466, %v838, %v845
        %v848 = vunpack.c.l.s4 1934713408
        %v849 = vunpack.c.0.s8 %v848
        %v850 = vperm.slane %v844, %v849
        %v852 = vunpack.c.l.s4 1934713408
        %v853 = vunpack.c.0.s8 %v852
        %v854 = vperm.slane %v846, %v853
        %v855 = vrot.slane %v842, 4
        %v856 = vsel %vm466, %v855, %v832
        %v857 = vrot.slane %v832, 4
        %v858 = vsel %vm466, %v842, %v857
        %v860 = vunpack.c.l.s4 1934713408
        %v861 = vunpack.c.0.s8 %v860
        %v862 = vperm.slane %v856, %v861
        %v864 = vunpack.c.l.s4 1934713408
        %v865 = vunpack.c.0.s8 %v864
        %v866 = vperm.slane %v858, %v865
        %v867 = vrot.slane %v850, 4
        %v868 = vsel %vm466, 0.0, %v867
        %v869 = vrot.slane %v854, 4
        %v870 = vsel %vm466, 0.0, %v869
        %v871 = vrot.slane %v862, 4
        %v872 = vsel %vm466, 0.0, %v871
        %v873 = vrot.slane %v866, 4
        %v874 = vsel %vm466, 0.0, %v873
        %v875 = vsel %vm466, %v869, %v850
        %v877 = vunpack.c.l.s4 1983009808
        %v878 = vunpack.c.0.s8 %v877
        %v879 = vperm.slane %v875, %v878
        %v880 = vrot.slane %v870, 4
        %v881 = vsel %vm466, %v880, %v868
        %v883 = vunpack.c.l.s4 1983009808
        %v884 = vunpack.c.0.s8 %v883
        %v885 = vperm.slane %v881, %v884
        %v886 = vsel %vm466, %v873, %v862
        %v888 = vunpack.c.l.s4 1983009808
        %v889 = vunpack.c.0.s8 %v888
        %v890 = vperm.slane %v886, %v889
        %v891 = vrot.slane %v874, 4
        %v892 = vsel %vm466, %v891, %v872
        %v894 = vunpack.c.l.s4 1983009808
        %v895 = vunpack.c.0.s8 %v894
        %v896 = vperm.slane %v892, %v895
        %v897 = vrot.slane %v885, 4
        %v898 = vsel %vm466, %v897, %v879
        %v900 = vunpack.c.l.s4 1934713408
        %v901 = vunpack.c.0.s8 %v900
        %v902 = vperm.slane %v898, %v901
        %v903 = vrot.slane %v896, 4
        %v904 = vsel %vm466, %v903, %v890
        %v906 = vunpack.c.l.s4 1934713408
        %v907 = vunpack.c.0.s8 %v906
        %v908 = vperm.slane %v904, %v907
        %v909 = vrot.slane %v908, 4
        %v910 = vsel %vm466, %v909, %v902
        %v911 = vrot.slane %v902, 4
        %v912 = vsel %vm466, %v908, %v911
        %v913 = vrot.slane %v910, 4
        %v914 = vsel %vm466, 0.0, %v913
        %v916 = vunpack.c.l.s4 1983009808
        %v917 = vunpack.c.0.s8 %v916
        %v918 = vperm.slane %v910, %v917
        %v920 = vunpack.c.l.s4 1983009808
        %v921 = vunpack.c.0.s8 %v920
        %v922 = vperm.slane %v914, %v921
        %v923 = vrot.slane %v912, 4
        %v924 = vsel %vm466, 0.0, %v923
        %v926 = vunpack.c.l.s4 1983009808
        %v927 = vunpack.c.0.s8 %v926
        %v928 = vperm.slane %v912, %v927
        %v930 = vunpack.c.l.s4 1983009808
        %v931 = vunpack.c.0.s8 %v930
        %v932 = vperm.slane %v924, %v931
        %v933 = vrot.slane %v928, 4
        %v934 = vsel %vm466, %v933, %v918
        %v935 = vrot.slane %v918, 4
        %v936 = vsel %vm466, %v928, %v935
        %v938 = vunpack.c.l.s4 1934713408
        %v939 = vunpack.c.0.s8 %v938
        %v940 = vperm.slane %v934, %v939
        %v942 = vunpack.c.l.s4 1934713408
        %v943 = vunpack.c.0.s8 %v942
        %v944 = vperm.slane %v936, %v943
        %v945 = vrot.slane %v932, 4
        %v946 = vsel %vm466, %v945, %v922
        %v947 = vrot.slane %v922, 4
        %v948 = vsel %vm466, %v932, %v947
        %v950 = vunpack.c.l.s4 1934713408
        %v951 = vunpack.c.0.s8 %v950
        %v952 = vperm.slane %v946, %v951
        %v954 = vunpack.c.l.s4 1934713408
        %v955 = vunpack.c.0.s8 %v954
        %v956 = vperm.slane %v948, %v955
        %v957 = vrot.slane %v940, 4
        %v958 = vsel %vm466, 0.0, %v957
        %v959 = vrot.slane %v944, 4
        %v960 = vsel %vm466, 0.0, %v959
        %v961 = vrot.slane %v952, 4
        %v962 = vsel %vm466, 0.0, %v961
        %v963 = vrot.slane %v956, 4
        %v964 = vsel %vm466, 0.0, %v963
        %966 = vrot.lane.b32.xlu0 %v958, 8
        %v967 = vpop.permute.xlu0 %966
        %970 = vrot.lane.b32.xlu0 %v944, 16
        %v971 = vpop.permute.xlu0 %970
        %974 = vrot.lane.b32.xlu0 %v960, 24
        %v975 = vpop.permute.xlu0 %974
        %978 = vrot.lane.b32.xlu0 %v952, 32
        %v979 = vpop.permute.xlu0 %978
        %982 = vrot.lane.b32.xlu0 %v962, 40
        %v983 = vpop.permute.xlu0 %982
        %986 = vrot.lane.b32.xlu0 %v956, 48
        %v987 = vpop.permute.xlu0 %986
        %990 = vrot.lane.b32.xlu0 %v964, 56
        %v991 = vpop.permute.xlu0 %990
        %v993 = vsel %vm654, %v940, %v967
        %v994 = vsel %vm200, %v993, %v971
        %vm995 = vcmask 195584
        %v996 = vsel %vm995, %v994, %v975
        %vm997 = vcmask 261120
        %v998 = vsel %vm997, %v996, %v979
        %vm999 = vcmask 326656
        %v1000 = vsel %vm999, %v998, %v983
        %vm1001 = vcmask 392192
        %v1002 = vsel %vm1001, %v1000, %v987
        %vm1003 = vcmask 457728
        %v1004 = vsel %vm1003, %v1002, %v991
        %vm1005 = vcmask 517120
        %1006 = vst.msk [vmem:[%s191] sm:$0x3] %vm1005, %v1004
        %s1007 = sand.u32 %s96, 1
        %s1008 = scalar_lea.sflag [#allocation4], %s1007
        %s1009 = sand.u32 %s96, 1
        %s1010 = smul.addr %s1009, 2
        %s1011 = scalar_lea.vmem [#allocation5], %s1010
        // Predicated region
        $region37: #{tpu_custom_call.1} parent=31 // pred_check
          %p1012 = pneg %p106
        $region38: #{tpu_custom_call.1} parent=31 // pred_check_branch
          %1014 = sbr.rel (%p1012) target = $region40
        $region39: #{tpu_custom_call.1} parent=31 // pred_region
          %1016 = vsyncadd %s1008, 0
          %s1017 = smul.addr %s20, 2
          %s1018 = scalar_lea.hbm %s3, %s1017
          %s1020 = sshll.u32 %s1011, 4
          %s1021 = int_to_ptr.vmem [resolvable:$true] %s1020
          %s1022 = sshll.u32 %s1018, 4
          %s1023 = int_to_ptr.hbm [resolvable:$true] %s1022
          %1025 = dma.vmem_to_hbm [thread:$0]  %s1021, 32, %s1023, %s1008
        $region40: #{tpu_custom_call.1} parent=31 // pred_fallthru
          _
      $region32: #{tpu_custom_call.1} parent=5 // pred_fallthru
        _
      %p1026 = scmp.le.s32.totalorder 2, %s15
      // Predicated region
      $region41: #{tpu_custom_call.1} parent=5 // pred_check
        %p1027 = pneg %p1026
      $region42: #{tpu_custom_call.1} parent=5 // pred_check_branch
        %1029 = sbr.rel (%p1027) target = $region44
      $region43: #{tpu_custom_call.1} parent=5 // pred_region
        %s1030 = ssub.s32 %s15, 2
        // Predicated region
        $region45: #{tpu_custom_call.1} parent=43 // pred_check
          %p1031 = pneg %p112
        $region46: #{tpu_custom_call.1} parent=43 // pred_check_branch
          %1033 = sbr.rel (%p1031) target = $region48
        $region47: #{tpu_custom_call.1} parent=43 // pred_region
          %s1034 = sand.u32 %s97, 1
          %s1035 = scalar_lea.sflag [#allocation4], %s1034
          %s1036 = sand.u32 %s97, 1
          %s1037 = smul.addr %s1036, 2
          %s1038 = scalar_lea.vmem [#allocation5], %s1037
          %1040 = dma.done %s1035, 32
        $region48: #{tpu_custom_call.1} parent=43 // pred_fallthru
          _
      $region44: #{tpu_custom_call.1} parent=5 // pred_fallthru
        _
    $region6: #{tpu_custom_call.1} parent=1 // loop_footer
      %s19 = sadd.s32 1, %s15
    $region7: #{tpu_custom_call.1} parent=1 // loop_footer_branch
      %14 = sbr.rel target = $region3
    $region8: #{tpu_custom_call.1} parent=1 // loop_exit
      _
    %1041 = vsyncpa [#allocation3], 1
    %s1042 = scalar_lea.sflag [#allocation3], 1
    %1043 = vsyncpa %s1042, 1
    %1044 = vsyncpa [#allocation4], 1
    %s1045 = scalar_lea.sflag [#allocation4], 1
    %1046 = vsyncpa %s1045, 1

</llo_original>
